<compile_context>
chip_gen: v5e
topology: v5e:2x2
jax: 0.10.0
libtpu: 0.0.40
codegen_flags: <defaults>
</compile_context>

<pallas_src>
import functools

import jax
import jax.numpy as jnp
from jax.experimental import pallas as pl
from jax.experimental.pallas import tpu as pltpu


def _round_up(x: int, m: int) -> int:
    return (x + m - 1) // m * m


def _grad_linear_kernel_single_k(x_ref, w_ref, b_ref, o_ref):
    # Whole contraction in one tile: dot -> bias add -> store.  No scratch.
    acc = jnp.dot(x_ref[...], w_ref[...], preferred_element_type=jnp.float32)
    o_ref[...] = (acc + b_ref[...].astype(jnp.float32)).astype(o_ref.dtype)


def _grad_linear_kernel_multi_k(x_ref, w_ref, b_ref, o_ref, acc_ref):
    # Grid = (M tiles, N tiles, K tiles); K (reduction) is the last axis so the
    # f32 accumulator stays resident across it (P3 init/finalize pattern).
    k = pl.program_id(2)

    @pl.when(k == 0)
    def _():
        # Fold the bias into the accumulator init; saves a finalize add pass.
        acc_ref[...] = jnp.broadcast_to(
            b_ref[...].astype(jnp.float32), acc_ref.shape
        )

    # x tile [tm, tk] @ w tile [tk, tn] -> MXU, f32 accumulation.
    acc_ref[...] += jnp.dot(
        x_ref[...], w_ref[...], preferred_element_type=jnp.float32
    )

    @pl.when(k == pl.num_programs(2) - 1)
    def _():
        o_ref[...] = acc_ref[...].astype(o_ref.dtype)


def grad_linear(
    x,
    weights,
    bias,
    *,
    block_m: int = 256,
    block_n: int = 256,
    block_k: int = 512,
    operand_dtype=None,
):
    """y = x @ weights.T + bias (PyTorch F.linear semantics) via Pallas.

    x:       [M, K]
    weights: [N, K]   (nn.Linear convention)
    bias:    [N]
    returns: [M, N], dtype of x.
    """
    M, K = x.shape
    N, K2 = weights.shape
    assert K == K2 and bias.shape == (N,)
    out_dtype = x.dtype

    # One-time relayout outside the kernel: feed the MXU a [K, N] RHS so the
    # kernel contracts (1,)x(0,) with no per-step weight transpose.
    w_t = weights.T  # [K, N]

    if operand_dtype is not None:
        x = x.astype(operand_dtype)
        w_t = w_t.astype(operand_dtype)

    # Tile sizes: lane dims multiples of 128, sublane dims multiples of 8
    # (16 for bf16 operands); clamp so tiny problems don't over-pad.
    sub = 16 if x.dtype == jnp.bfloat16 else 8
    tm = min(block_m, _round_up(M, sub))
    tn = min(block_n, _round_up(N, 128))
    tk = min(block_k, _round_up(K, 128))

    Mp = _round_up(M, tm)
    Np = _round_up(N, tn)
    Kp = _round_up(K, tk)

    # Zero-pad to tile multiples (zeros along K are neutral in the dot).
    if (Mp, Kp) != (M, K):
        x = jnp.pad(x, ((0, Mp - M), (0, Kp - K)))
    if (Kp, Np) != (K, N):
        w_t = jnp.pad(w_t, ((0, Kp - K), (0, Np - N)))
    b2d = bias.reshape(1, N)
    if Np != N:
        b2d = jnp.pad(b2d, ((0, 0), (0, Np - N)))

    grid_m, grid_n, grid_k = Mp // tm, Np // tn, Kp // tk

    # VMEM budget: double-buffered x/w/out/bias tiles + resident accumulator.
    itemsize = jnp.dtype(x.dtype).itemsize
    tile_bytes = (
        2 * tm * tk * itemsize                            # x tiles
        + 2 * tk * tn * itemsize                          # w tiles
        + 2 * tm * tn * jnp.dtype(out_dtype).itemsize     # out tiles
        + 2 * tn * jnp.dtype(bias.dtype).itemsize         # bias tiles
        + (tm * tn * 4 if grid_k > 1 else 0)              # f32 accumulator
    )
    vmem_limit = min(max(tile_bytes * 2, 32 << 20), 64 << 20)

    cost = pl.CostEstimate(
        flops=2 * M * N * K,
        transcendentals=0,
        bytes_accessed=(
            M * K * itemsize
            + K * N * itemsize
            + N * jnp.dtype(bias.dtype).itemsize
            + M * N * jnp.dtype(out_dtype).itemsize
        ),
    )

    if grid_k == 1:
        kernel = _grad_linear_kernel_single_k
        grid = (grid_m, grid_n)
        in_specs = [
            pl.BlockSpec((tm, tk), lambda i, j: (i, 0)),   # x tile
            pl.BlockSpec((tk, tn), lambda i, j: (0, j)),   # W^T tile
            pl.BlockSpec((1, tn), lambda i, j: (0, j)),    # bias tile
        ]
        out_specs = pl.BlockSpec((tm, tn), lambda i, j: (i, j))
        scratch_shapes = []
        dim_sem = ("parallel", "parallel")
    else:
        kernel = _grad_linear_kernel_multi_k
        grid = (grid_m, grid_n, grid_k)
        in_specs = [
            pl.BlockSpec((tm, tk), lambda i, j, k: (i, k)),   # x tile
            pl.BlockSpec((tk, tn), lambda i, j, k: (k, j)),   # W^T tile
            pl.BlockSpec((1, tn), lambda i, j, k: (0, j)),    # bias tile
        ]
        out_specs = pl.BlockSpec((tm, tn), lambda i, j, k: (i, j))
        scratch_shapes = [pltpu.VMEM((tm, tn), jnp.float32)]
        dim_sem = ("parallel", "parallel", "arbitrary")

    out_padded = pl.pallas_call(
        kernel,
        out_shape=jax.ShapeDtypeStruct((Mp, Np), out_dtype),
        grid_spec=pltpu.PrefetchScalarGridSpec(
            num_scalar_prefetch=0,
            grid=grid,
            in_specs=in_specs,
            out_specs=out_specs,
            scratch_shapes=scratch_shapes,
        ),
        compiler_params=pltpu.CompilerParams(
            dimension_semantics=dim_sem,
            vmem_limit_bytes=int(vmem_limit),
        ),
        cost_estimate=cost,
    )(x, w_t, b2d)

    if (Mp, Np) != (M, N):
        out_padded = out_padded[:M, :N]
    return out_padded


def _init_linear_params(key, in_features, out_features, dtype=jnp.float32):
    # Deterministic init matching nn.Linear's default (uniform +/- 1/sqrt(in)).
    kw, kb = jax.random.split(key)
    bound = 1.0 / jnp.sqrt(jnp.asarray(in_features, dtype))
    weights = jax.random.uniform(
        kw, (out_features, in_features), dtype, minval=-bound, maxval=bound)
    bias = jax.random.uniform(
        kb, (out_features,), dtype, minval=-bound, maxval=bound)
    return weights, bias


if __name__ == "__main__":
    key = jax.random.PRNGKey(0)
    k_x, k_p = jax.random.split(key)

    # Small shapes consistent with GradLinear (an MLP layer): batch=8, 32->16.
    batch, in_features, out_features = 8, 32, 16
    x = jax.random.normal(k_x, (batch, in_features), jnp.float32)
    weights, bias = _init_linear_params(k_p, in_features, out_features)

    y = jax.jit(grad_linear)(x, weights, bias)
    y = jax.block_until_ready(y)

    # Reference check against plain-JAX F.linear semantics.
    y_ref = x @ weights.T + bias
    assert y.shape == (batch, out_features)
    assert jnp.allclose(y, y_ref, atol=1e-5, rtol=1e-5)

    # Also exercise a shape that needs padding + multiple tiles on every axis
    # (including a multi-step K reduction with the resident accumulator).
    k_x2, k_p2 = jax.random.split(k_p)
    x2 = jax.random.normal(k_x2, (300, 555), jnp.float32)
    w2, b2 = _init_linear_params(k_p2, 555, 333)
    f2 = jax.jit(functools.partial(
        grad_linear, block_m=128, block_n=128, block_k=256))
    y2 = jax.block_until_ready(f2(x2, w2, b2))
    y2_ref = x2 @ w2.T + b2
    assert y2.shape == (300, 333)
    assert jnp.allclose(y2, y2_ref, atol=1e-4, rtol=1e-4)

    print("KERNEL_OK")
</pallas_src>

<mosaic_0001>
module attributes {stable_mosaic.version = 11 : i64} {
  func.func @_grad_linear_kernel_single_k(%arg0: i32, %arg1: i32, %arg2: memref<8x128xf32, #tpu.memory_space<vmem>>, %arg3: memref<128x128xf32, #tpu.memory_space<vmem>>, %arg4: memref<1x128xf32, #tpu.memory_space<vmem>>, %arg5: memref<8x128xf32, #tpu.memory_space<vmem>>) attributes {dimension_semantics = [#tpu.dimension_semantics<parallel>, #tpu.dimension_semantics<parallel>], iteration_bounds = array<i64: 1, 1>, scalar_prefetch = 0 : i64, scratch_operands = 0 : i64, tpu.core_type = #tpu.core_type<tc>, window_params = [{transform_indices = @transform_0, window_bounds = array<i64: 8, 128>}, {transform_indices = @transform_1, window_bounds = array<i64: 128, 128>}, {transform_indices = @transform_2, window_bounds = array<i64: 1, 128>}, {transform_indices = @transform_3, window_bounds = array<i64: 8, 128>}]} {
    %c0 = arith.constant 0 : index
    %c0_0 = arith.constant 0 : index
    %0 = vector.load %arg2[%c0, %c0_0] : memref<8x128xf32, #tpu.memory_space<vmem>>, vector<8x128xf32>
    %c0_1 = arith.constant 0 : index
    %c0_2 = arith.constant 0 : index
    %1 = vector.load %arg3[%c0_1, %c0_2] : memref<128x128xf32, #tpu.memory_space<vmem>>, vector<128x128xf32>
    %cst = arith.constant dense<0.000000e+00> : vector<8x128xf32>
    %2 = tpu.matmul %0, %1, %cst {dimension_numbers = #tpu.dot_dimension_numbers<[1], [0], [0], [1], [0, 0, 1, 1], [], []>} : vector<8x128xf32>, vector<128x128xf32>, vector<8x128xf32> -> vector<8x128xf32>
    %c0_3 = arith.constant 0 : index
    %c0_4 = arith.constant 0 : index
    %3 = vector.load %arg4[%c0_3, %c0_4] : memref<1x128xf32, #tpu.memory_space<vmem>>, vector<1x128xf32>
    %4 = vector.broadcast %3 : vector<1x128xf32> to vector<8x128xf32>
    %5 = arith.addf %2, %4 : vector<8x128xf32>
    %c0_5 = arith.constant 0 : index
    %c0_6 = arith.constant 0 : index
    %6 = vector.load %arg5[%c0_5, %c0_6] : memref<8x128xf32, #tpu.memory_space<vmem>>, vector<8x128xf32>
    tpu.vector_store %arg5[%c0_5, %c0_6], %5 {strides = array<i32>} : memref<8x128xf32, #tpu.memory_space<vmem>>, vector<8x128xf32>,
    return
  }
  func.func @transform_0(%arg0: i32, %arg1: i32) -> (i32, i32) {
    %c0_i32 = arith.constant 0 : i32
    %c0_i32_0 = arith.constant 0 : i32
    return %arg0, %c0_i32 : i32, i32
  }
  func.func @transform_1(%arg0: i32, %arg1: i32) -> (i32, i32) {
    %c0_i32 = arith.constant 0 : i32
    %c0_i32_0 = arith.constant 0 : i32
    return %c0_i32, %arg1 : i32, i32
  }
  func.func @transform_2(%arg0: i32, %arg1: i32) -> (i32, i32) {
    %c0_i32 = arith.constant 0 : i32
    %c0_i32_0 = arith.constant 0 : i32
    return %c0_i32, %arg1 : i32, i32
  }
  func.func @transform_3(%arg0: i32, %arg1: i32) -> (i32, i32) {
    %c0_i32 = arith.constant 0 : i32
    return %arg0, %arg1 : i32, i32
  }
}

</mosaic_0001>

<llo_original>
// kernel: grad_linear.1
$region0: #{grad_linear.1}
  #allocation0 [shape = 'u32[]', space=smem, size = 0x4, offset = 0x4, fixed_abs, tag = 'smem constant byte address 0x4 - core index']
  #allocation1 [shape = 'u32[72,128]{1,0:T(1,128)}', space=vmem, size = 0x9000, scoped, tag = 'internal scratch']
  %s0 = inlined_call_operand.vmem [shape: f32[8,128], index: 0, kind: input, shape index: {}]
  %s1 = inlined_call_operand.vmem [shape: f32[128,128], index: 1, kind: input, shape index: {}]
  %s2 = inlined_call_operand.vmem [shape: f32[1,128], index: 2, kind: input, shape index: {}]
  %s3 = inlined_call_operand.hbm [shape: f32[8,128], index: 3, kind: output, shape index: {}]
  %s4 = sld [smem:[#allocation0]]
  $region22: #{grad_linear.1} parent=0
    _
  %s6 = ssub.s32 1, %s4
  %s7 = scalar_select 0, %s6, %s4
  $region1: #{grad_linear.1} parent=0
    #allocation2 [shape = 'u8[4096]{0}', space=vmem, size = 0x1000, scoped, tag = 'output window, operand 0, single buffered']
    #allocation3 [shape = 's32[1]{0}', space=sflag, size = 0x4, scoped, tag = 'scoped memory for grad_linear.1']
    %8 = vsyncpa [#allocation3], 0
    // Predicated region
    $region2: #{grad_linear.1} parent=1 // pred_check
      _
    $region3: #{grad_linear.1} parent=1 // pred_check_branch
      %10 = sbr.rel (0) target = $region5
    $region4: #{grad_linear.1} parent=1 // pred_region
      _
    $region5: #{grad_linear.1} parent=1 // pred_fallthru
      _
    // Predicated region
    $region6: #{grad_linear.1} parent=1 // pred_check
      _
    $region7: #{grad_linear.1} parent=1 // pred_check_branch
      %12 = sbr.rel (0) target = $region9
    $region8: #{grad_linear.1} parent=1 // pred_region
      _
    $region9: #{grad_linear.1} parent=1 // pred_fallthru
      _
    // Predicated region
    $region10: #{grad_linear.1} parent=1 // pred_check
      _
    $region11: #{grad_linear.1} parent=1 // pred_check_branch
      %14 = sbr.rel (0) target = $region13
    $region12: #{grad_linear.1} parent=1 // pred_region
      _
    $region13: #{grad_linear.1} parent=1 // pred_fallthru
      _
    %v15 = vld [vmem:[%s0] sm:$0xff]
    %v16 = vld [vmem:[%s1] sm:$0xff]
    %v17 = vld [vmem:[%s1 + $0x8] sm:$0xff]
    %v18 = vld [vmem:[%s1 + $0x10] sm:$0xff]
    %v19 = vld [vmem:[%s1 + $0x18] sm:$0xff]
    %v20 = vld [vmem:[%s1 + $0x20] sm:$0xff]
    %v21 = vld [vmem:[%s1 + $0x28] sm:$0xff]
    %v22 = vld [vmem:[%s1 + $0x30] sm:$0xff]
    %v23 = vld [vmem:[%s1 + $0x38] sm:$0xff]
    %v24 = vld [vmem:[%s1 + $0x40] sm:$0xff]
    %v25 = vld [vmem:[%s1 + $0x48] sm:$0xff]
    %v26 = vld [vmem:[%s1 + $0x50] sm:$0xff]
    %v27 = vld [vmem:[%s1 + $0x58] sm:$0xff]
    %v28 = vld [vmem:[%s1 + $0x60] sm:$0xff]
    %v29 = vld [vmem:[%s1 + $0x68] sm:$0xff]
    %v30 = vld [vmem:[%s1 + $0x70] sm:$0xff]
    %v31 = vld [vmem:[%s1 + $0x78] sm:$0xff]
    %v32 = vld [vmem:[%s2] sm:$0x1]
    %v34 = vperm.slane %v32, 0
    %36 = vmatpush.msra.mxu0 %v31
    %37 = vmatpush.msra.mxu0 %v30
    %38 = vmatpush.msra.mxu0 %v29
    %39 = vmatpush.msra.mxu0 %v28
    %40 = vmatpush.msra.mxu0 %v27
    %41 = vmatpush.msra.mxu0 %v26
    %42 = vmatpush.msra.mxu0 %v25
    %43 = vmatpush.msra.mxu0 %v24
    %44 = vmatpush.msra.mxu0 %v23
    %45 = vmatpush.msra.mxu0 %v22
    %46 = vmatpush.msra.mxu0 %v21
    %47 = vmatpush.msra.mxu0 %v20
    %48 = vmatpush.msra.mxu0 %v19
    %49 = vmatpush.msra.mxu0 %v18
    %50 = vmatpush.msra.mxu0 %v17
    %51 = vmatpush.msra.mxu0 %v16
    %52 = vmatmul.f32.gmra.mxu0 %v15
    %v53 = vpop.f32.mrf.mxu0
    %v54 = vadd.f32 %v34, %v53
    %55 = vdwg.mxu0
    %56 = vst [vmem:[#allocation2] sm:$0xff] %v54
    // Predicated region
    $region14: #{grad_linear.1} parent=1 // pred_check
      _
    $region15: #{grad_linear.1} parent=1 // pred_check_branch
      %58 = sbr.rel (0) target = $region17
    $region16: #{grad_linear.1} parent=1 // pred_region
      %60 = vsyncadd [#allocation3], 0
      %s62 = sshll.u32 [#allocation2], 4
      %s63 = int_to_ptr.vmem [resolvable:$true] %s62
      %s64 = sshll.u32 %s3, 4
      %s65 = int_to_ptr.hbm [resolvable:$true] %s64
      %67 = dma.vmem_to_hbm [thread:$0]  %s63, 128, %s65, [#allocation3]
    $region17: #{grad_linear.1} parent=1 // pred_fallthru
      _
    // Predicated region
    $region18: #{grad_linear.1} parent=1 // pred_check
      _
    $region19: #{grad_linear.1} parent=1 // pred_check_branch
      %69 = sbr.rel (0) target = $region21
    $region20: #{grad_linear.1} parent=1 // pred_region
      %71 = dma.done [#allocation3], 128
    $region21: #{grad_linear.1} parent=1 // pred_fallthru
      _
    %72 = vsyncpa [#allocation3], 1

</llo_original>
